<compile_context>
chip_gen: v5e
topology: v5e:2x2
jax: 0.10.0
libtpu: 0.0.40
codegen_flags: <defaults>
</compile_context>

<pallas_src>
import jax
import jax.numpy as jnp
from jax.experimental import pallas as pl
from jax.experimental.pallas import tpu as pltpu

SLOPE = 10.0
_LANE = 128
_WIDTHS = (8192, 4096, 2048, 1024, 512, 256, 128)
_FWD_TILE_BYTES = 2 * 1024 * 1024   # per-operand block target (planned at 4 B/elem)
_BWD_TILE_BYTES = 2 * 1024 * 1024
_MIN_STEPS = 4                      # keep >= ~4 grid steps for pipelining / v7x 2 TCs


def _round_up(n, m):
    return ((n + m - 1) // m) * m


# ----------------------------------------------------------------------------- kernels
def _fwd_kernel(x_ref, t_ref, o_ref):
    # Runtime value of hard + (soft - stop_grad(soft)) is exactly the hard round.
    x = x_ref[...].astype(jnp.float32)
    t = jnp.clip(t_ref[...].astype(jnp.float32), 0.0, 1.0)
    o_ref[...] = (x >= t).astype(o_ref.dtype)


def _bwd_kernel(x_ref, t_ref, g_ref, dx_ref, dt_ref):
    x = x_ref[...].astype(jnp.float32)
    t_raw = t_ref[...].astype(jnp.float32)
    g = g_ref[...].astype(jnp.float32)
    t = jnp.clip(t_raw, 0.0, 1.0)
    soft = jax.nn.sigmoid(SLOPE * (x - t))
    dsoft = (SLOPE * soft * (1.0 - soft)) * g
    dx_ref[...] = dsoft.astype(dx_ref.dtype)
    # clamp's gradient zeroes out where threshold is outside [0, 1]
    inside = jnp.logical_and(t_raw >= 0.0, t_raw <= 1.0)
    dt_ref[...] = jnp.where(inside, -dsoft, 0.0).astype(dt_ref.dtype)


# Plain-jnp references used for the (rare) <=127-element misaligned tail.
def _fwd_ref(x, t):
    xf = x.astype(jnp.float32)
    tf = jnp.clip(t.astype(jnp.float32), 0.0, 1.0)
    return ((xf >= tf).astype(x.dtype),)


def _bwd_ref(x, t_raw, g):
    xf = x.astype(jnp.float32)
    tf = t_raw.astype(jnp.float32)
    gf = g.astype(jnp.float32)
    t = jnp.clip(tf, 0.0, 1.0)
    soft = jax.nn.sigmoid(SLOPE * (xf - t))
    dsoft = SLOPE * soft * (1.0 - soft) * gf
    inside = jnp.logical_and(tf >= 0.0, tf <= 1.0)
    return dsoft.astype(x.dtype), jnp.where(inside, -dsoft, 0.0).astype(t_raw.dtype)


# ----------------------------------------------------------------------------- planning
def _plan_2d(total, tile_bytes):
    """Pick a lane-dense slab (rows, width) and a block that keeps the grid pipelined."""
    assert total % _LANE == 0
    # Largest width that divides `total` and still leaves >= 8 rows, else largest divisor.
    width = _LANE
    for w in _WIDTHS:
        if total % w == 0 and total // w >= 8:
            width = w
            break
    else:
        for w in _WIDTHS:
            if total % w == 0:
                width = w
                break
    rows = total // width

    if rows <= 8:
        block_rows = rows                      # full-extent block (ok vs (8,128) rule)
    else:
        # ~tile_bytes per operand (planned at 4 B/elem, conservative for bf16)
        target_rows = max(8, (tile_bytes // (width * 4)) // 8 * 8)
        # ...but never fewer than ~_MIN_STEPS grid steps, so DMA overlaps compute
        # and v7x can split the "parallel" axis across its two TensorCores.
        steps_cap_rows = max(8, _round_up(pl.cdiv(rows, _MIN_STEPS), 8))
        block_rows = min(target_rows, steps_cap_rows)

    grid = pl.cdiv(rows, block_rows)
    return width, rows, block_rows, grid


# ----------------------------------------------------------------------------- launcher
def _launch_elementwise(kernel, tail_fn, inputs, out_dtypes, tile_bytes):
    total = int(inputs[0].size)
    orig_shape = inputs[0].shape
    n_out = len(out_dtypes)
    flat = [a.reshape(-1) for a in inputs]

    tail = total % _LANE
    main = total - tail

    if main == 0:
        # Tiny (<128 elem) array: not worth a kernel launch.
        outs = tail_fn(*flat)
        res = tuple(o.reshape(orig_shape) for o in outs)
        return res if n_out > 1 else res[0]

    width, rows, block_rows, grid = _plan_2d(main, tile_bytes)

    def to2d(a):
        a = a if tail == 0 else a[:main]
        return a.reshape(rows, width)

    ins2d = [to2d(a) for a in flat]

    in_specs = [pl.BlockSpec((block_rows, width), lambda i: (i, 0)) for _ in inputs]
    out_specs = tuple(
        pl.BlockSpec((block_rows, width), lambda i: (i, 0)) for _ in out_dtypes
    )
    out_shape = tuple(jax.ShapeDtypeStruct((rows, width), d) for d in out_dtypes)

    # Explicit VMEM budget: double-buffered blocks for every operand + headroom.
    vmem_bytes = sum(2 * block_rows * width * jnp.dtype(a.dtype).itemsize for a in inputs)
    vmem_bytes += sum(2 * block_rows * width * jnp.dtype(d).itemsize for d in out_dtypes)
    vmem_limit = int(min(max(vmem_bytes + (6 << 20), 16 << 20), 30 << 20))

    outs = pl.pallas_call(
        kernel,
        out_shape=out_shape if n_out > 1 else out_shape[0],
        grid_spec=pltpu.PrefetchScalarGridSpec(
            num_scalar_prefetch=0,
            grid=(grid,),
            in_specs=in_specs,
            out_specs=out_specs if n_out > 1 else out_specs[0],
        ),
        compiler_params=pltpu.CompilerParams(
            dimension_semantics=("parallel",),
            vmem_limit_bytes=vmem_limit,
        ),
    )(*ins2d)

    if n_out == 1:
        outs = (outs,)

    if tail:
        tail_outs = tail_fn(*[a[main:] for a in flat])
        results = tuple(
            jnp.concatenate([o.reshape(-1), to], axis=0).reshape(orig_shape)
            for o, to in zip(outs, tail_outs)
        )
    else:
        results = tuple(o.reshape(orig_shape) for o in outs)
    return results if n_out > 1 else results[0]


# ----------------------------------------------------------------------------- public op
def _forward(x, threshold):
    return _launch_elementwise(
        _fwd_kernel, _fwd_ref, [x, threshold], (x.dtype,), _FWD_TILE_BYTES
    )


@jax.custom_vjp
def threshold_binarize(x, threshold):
    """x, threshold: float arrays of identical shape (e.g. NCHW)."""
    return _forward(x, threshold)


def _fwd_rule(x, threshold):
    return _forward(x, threshold), (x, threshold)


def _bwd_rule(res, g):
    x, threshold = res
    dx, dt = _launch_elementwise(
        _bwd_kernel, _bwd_ref, [x, threshold, g],
        (x.dtype, threshold.dtype), _BWD_TILE_BYTES
    )
    return dx, dt


threshold_binarize.defvjp(_fwd_rule, _bwd_rule)


# ----------------------------------------------------------------------------- test
if __name__ == "__main__":
    key = jax.random.PRNGKey(0)
    kx, kt = jax.random.split(key)
    B, C, H, W = 2, 4, 16, 16
    x = jax.random.uniform(kx, (B, C, H, W), dtype=jnp.float32)
    # threshold intentionally allowed outside [0, 1] to exercise the clamp.
    threshold = jax.random.uniform(kt, (B, C, H, W), dtype=jnp.float32) * 1.4 - 0.2

    out = threshold_binarize(x, threshold)
    out = jax.block_until_ready(out)

    # Forward reference: value equals hard round with clamped threshold.
    t_clamped = jnp.clip(threshold, 0.0, 1.0)
    ref = (x >= t_clamped).astype(jnp.float32)
    assert out.shape == (B, C, H, W)
    assert out.dtype == x.dtype
    assert jnp.allclose(out, ref, atol=1e-6), "forward mismatch vs reference"

    # Gradient reference (STE path): d/dx = slope*s*(1-s), d/dt = -that, clamp-masked.
    dx, dt = jax.grad(
        lambda xx, tt: jnp.sum(threshold_binarize(xx, tt)), argnums=(0, 1)
    )(x, threshold)
    dx = jax.block_until_ready(dx)
    soft = jax.nn.sigmoid(SLOPE * (x - t_clamped))
    dsoft = SLOPE * soft * (1.0 - soft)
    ref_dx = dsoft
    ref_dt = -dsoft * ((threshold >= 0.0) & (threshold <= 1.0)).astype(jnp.float32)
    assert jnp.allclose(dx, ref_dx, atol=1e-5), "dx mismatch vs reference"
    assert jnp.allclose(dt, ref_dt, atol=1e-5), "dthreshold mismatch vs reference"

    print("KERNEL_OK")
</pallas_src>

<mosaic_0001>
module attributes {stable_mosaic.version = 11 : i64} {
  func.func @_fwd_kernel(%arg0: i32, %arg1: memref<8x256xf32, #tpu.memory_space<vmem>>, %arg2: memref<8x256xf32, #tpu.memory_space<vmem>>, %arg3: memref<8x256xf32, #tpu.memory_space<vmem>>) attributes {dimension_semantics = [#tpu.dimension_semantics<parallel>], iteration_bounds = array<i64: 1>, scalar_prefetch = 0 : i64, scratch_operands = 0 : i64, tpu.core_type = #tpu.core_type<tc>, window_params = [{transform_indices = @transform_0, window_bounds = array<i64: 8, 256>}, {transform_indices = @transform_1, window_bounds = array<i64: 8, 256>}, {transform_indices = @transform_2, window_bounds = array<i64: 8, 256>}]} {
    %c0 = arith.constant 0 : index
    %c0_0 = arith.constant 0 : index
    %0 = vector.load %arg1[%c0, %c0_0] : memref<8x256xf32, #tpu.memory_space<vmem>>, vector<8x256xf32>
    %c0_1 = arith.constant 0 : index
    %c0_2 = arith.constant 0 : index
    %1 = vector.load %arg2[%c0_1, %c0_2] : memref<8x256xf32, #tpu.memory_space<vmem>>, vector<8x256xf32>
    %cst = arith.constant 0.000000e+00 : f32
    %cst_3 = arith.constant 1.000000e+00 : f32
    %2 = vector.broadcast %cst : f32 to vector<8x256xf32>
    %3 = arith.maximumf %2, %1 : vector<8x256xf32>
    %4 = vector.broadcast %cst_3 : f32 to vector<8x256xf32>
    %5 = arith.minimumf %4, %3 : vector<8x256xf32>
    %6 = arith.cmpf oge, %0, %5 : vector<8x256xf32>
    %7 = arith.extui %6 : vector<8x256xi1> to vector<8x256xi32>
    %8 = arith.sitofp %7 : vector<8x256xi32> to vector<8x256xf32>
    %c0_4 = arith.constant 0 : index
    %c0_5 = arith.constant 0 : index
    %9 = vector.load %arg3[%c0_4, %c0_5] : memref<8x256xf32, #tpu.memory_space<vmem>>, vector<8x256xf32>
    tpu.vector_store %arg3[%c0_4, %c0_5], %8 {strides = array<i32>} : memref<8x256xf32, #tpu.memory_space<vmem>>, vector<8x256xf32>,
    return
  }
  func.func @transform_0(%arg0: i32) -> (i32, i32) {
    %c0_i32 = arith.constant 0 : i32
    %c0_i32_0 = arith.constant 0 : i32
    return %arg0, %c0_i32 : i32, i32
  }
  func.func @transform_1(%arg0: i32) -> (i32, i32) {
    %c0_i32 = arith.constant 0 : i32
    %c0_i32_0 = arith.constant 0 : i32
    return %arg0, %c0_i32 : i32, i32
  }
  func.func @transform_2(%arg0: i32) -> (i32, i32) {
    %c0_i32 = arith.constant 0 : i32
    %c0_i32_0 = arith.constant 0 : i32
    return %arg0, %c0_i32 : i32, i32
  }
}

</mosaic_0001>

<llo_original>
// kernel: tpu_custom_call.1
$region0: #{tpu_custom_call.1}
  #allocation0 [shape = 'u32[]', space=smem, size = 0x4, offset = 0x4, fixed_abs, tag = 'smem constant byte address 0x4 - core index']
  #allocation1 [shape = 'u32[72,128]{1,0:T(1,128)}', space=vmem, size = 0x9000, scoped, tag = 'internal scratch']
  %s0 = inlined_call_operand.hbm [shape: f32[8,256], index: 0, kind: input, shape index: {}]
  %s1 = inlined_call_operand.hbm [shape: f32[8,256], index: 1, kind: input, shape index: {}]
  %s2 = inlined_call_operand.hbm [shape: f32[8,256], index: 2, kind: output, shape index: {}]
  %s3 = sld [smem:[#allocation0]]
  $region26: #{tpu_custom_call.1} parent=0
    _
  %s5 = ssub.s32 1, %s3
  %s6 = scalar_select 0, %s5, %s3
  $region1: #{tpu_custom_call.1} parent=0
    #allocation2 [shape = 'u8[8192]{0}', space=vmem, size = 0x2000, scoped, tag = 'input window, operand 0, single buffered']
    #allocation3 [shape = 's32[1]{0}', space=sflag, size = 0x4, scoped, tag = 'scoped memory for tpu_custom_call.1']
    #allocation4 [shape = 's32[1]{0}', space=sflag, size = 0x4, scoped, tag = 'scoped memory for tpu_custom_call.1']
    #allocation5 [shape = 'u8[8192]{0}', space=vmem, size = 0x2000, scoped, tag = 'input window, operand 1, single buffered']
    #allocation6 [shape = 's32[1]{0}', space=sflag, size = 0x4, scoped, tag = 'scoped memory for tpu_custom_call.1']
    #allocation7 [shape = 'u8[8192]{0}', space=vmem, size = 0x2000, scoped, tag = 'output window, operand 0, single buffered']
    %7 = vsyncpa [#allocation3], 0
    %8 = vsyncpa [#allocation6], 0
    %9 = vsyncpa [#allocation4], 0
    // Predicated region
    $region2: #{tpu_custom_call.1} parent=1 // pred_check
      _
    $region3: #{tpu_custom_call.1} parent=1 // pred_check_branch
      %11 = sbr.rel (0) target = $region5
    $region4: #{tpu_custom_call.1} parent=1 // pred_region
      %13 = vsyncadd [#allocation3], 0
      %s15 = sshll.u32 %s0, 4
      %s16 = int_to_ptr.hbm [resolvable:$true] %s15
      %s17 = sshll.u32 [#allocation2], 4
      %s18 = int_to_ptr.vmem [resolvable:$true] %s17
      %20 = dma.hbm_to_vmem [thread:$0]  %s16, 256, %s18, [#allocation3]
    $region5: #{tpu_custom_call.1} parent=1 // pred_fallthru
      _
    // Predicated region
    $region6: #{tpu_custom_call.1} parent=1 // pred_check
      _
    $region7: #{tpu_custom_call.1} parent=1 // pred_check_branch
      %22 = sbr.rel (0) target = $region9
    $region8: #{tpu_custom_call.1} parent=1 // pred_region
      %24 = vsyncadd [#allocation6], 0
      %s26 = sshll.u32 %s1, 4
      %s27 = int_to_ptr.hbm [resolvable:$true] %s26
      %s28 = sshll.u32 [#allocation5], 4
      %s29 = int_to_ptr.vmem [resolvable:$true] %s28
      %31 = dma.hbm_to_vmem [thread:$0]  %s27, 256, %s29, [#allocation6]
    $region9: #{tpu_custom_call.1} parent=1 // pred_fallthru
      _
    // Predicated region
    $region10: #{tpu_custom_call.1} parent=1 // pred_check
      _
    $region11: #{tpu_custom_call.1} parent=1 // pred_check_branch
      %33 = sbr.rel (0) target = $region13
    $region12: #{tpu_custom_call.1} parent=1 // pred_region
      %35 = dma.done [#allocation3], 256
    $region13: #{tpu_custom_call.1} parent=1 // pred_fallthru
      _
    // Predicated region
    $region14: #{tpu_custom_call.1} parent=1 // pred_check
      _
    $region15: #{tpu_custom_call.1} parent=1 // pred_check_branch
      %37 = sbr.rel (0) target = $region17
    $region16: #{tpu_custom_call.1} parent=1 // pred_region
      %39 = dma.done [#allocation6], 256
    $region17: #{tpu_custom_call.1} parent=1 // pred_fallthru
      _
    %v40 = vld [vmem:[#allocation2] sm:$0xff]
    %v41 = vld [vmem:[#allocation2 + $0x8] sm:$0xff]
    %v42 = vld [vmem:[#allocation5] sm:$0xff]
    %v43 = vld [vmem:[#allocation5 + $0x8] sm:$0xff]
    %v44 = vmax.f32 %v42, 0.0
    %v45 = vmax.f32 %v43, 0.0
    %v46 = vmin.f32 %v44, 1.0
    %v47 = vmin.f32 %v45, 1.0
    %vm48 = vcmp.ge.f32.partialorder %v40, %v46
    %vm49 = vcmp.ge.f32.partialorder %v41, %v47
    %v50 = vsel %vm48, 1, 0
    %v51 = vsel %vm49, 1, 0
    %v52 = vcvt.s32.f32 %v50
    %v53 = vcvt.s32.f32 %v51
    %54 = vst [vmem:[#allocation7] sm:$0xff] %v52
    %55 = vst [vmem:[#allocation7 + $0x8] sm:$0xff] %v53
    // Predicated region
    $region18: #{tpu_custom_call.1} parent=1 // pred_check
      _
    $region19: #{tpu_custom_call.1} parent=1 // pred_check_branch
      %57 = sbr.rel (0) target = $region21
    $region20: #{tpu_custom_call.1} parent=1 // pred_region
      %59 = vsyncadd [#allocation4], 0
      %s61 = sshll.u32 [#allocation7], 4
      %s62 = int_to_ptr.vmem [resolvable:$true] %s61
      %s63 = sshll.u32 %s2, 4
      %s64 = int_to_ptr.hbm [resolvable:$true] %s63
      %66 = dma.vmem_to_hbm [thread:$0]  %s62, 256, %s64, [#allocation4]
    $region21: #{tpu_custom_call.1} parent=1 // pred_fallthru
      _
    // Predicated region
    $region22: #{tpu_custom_call.1} parent=1 // pred_check
      _
    $region23: #{tpu_custom_call.1} parent=1 // pred_check_branch
      %68 = sbr.rel (0) target = $region25
    $region24: #{tpu_custom_call.1} parent=1 // pred_region
      %70 = dma.done [#allocation4], 256
    $region25: #{tpu_custom_call.1} parent=1 // pred_fallthru
      _
    %71 = vsyncpa [#allocation3], 1
    %72 = vsyncpa [#allocation6], 1
    %73 = vsyncpa [#allocation4], 1

</llo_original>
